<compile_context>
chip_gen: v5e
topology: v5e:2x2
jax: 0.10.0
libtpu: 0.0.40
codegen_flags: <defaults>
</compile_context>

<pallas_src>
import jax
import jax.numpy as jnp
from jax.experimental import pallas as pl
from jax.experimental.pallas import tpu as pltpu


def _round_up(x, m):
    return (x + m - 1) // m * m


# -----------------------------------------------------------------------------
# Kernel
# -----------------------------------------------------------------------------
def _none_linear_kernel(x_ref, w1_ref, b1_ref, w2_ref, b2_ref, o_ref):
    # x tile arrives in its original dtype; cast to the MXU compute dtype here in
    # VMEM (cheap VPU work hidden under the matmul) instead of in the wrapper.
    x = x_ref[...].astype(w1_ref.dtype)                          # [TB, D_pad]
    h = jnp.dot(x, w1_ref[...],
                preferred_element_type=jnp.float32)              # [TB, H_pad] f32
    h = jnp.maximum(h + b1_ref[...], 0.0)                        # bias + ReLU (f32)
    # Dropout(p=0.1): eval-mode identity.
    y = jnp.dot(h.astype(w2_ref.dtype), w2_ref[...],
                preferred_element_type=jnp.float32)              # [TB, O] f32
    o_ref[...] = (y + b2_ref[...]).astype(o_ref.dtype)


# -----------------------------------------------------------------------------
# One-time parameter preparation (hoisted out of the per-call path)
# -----------------------------------------------------------------------------
def prepare_params(w1, b1, w2, b2, *, compute_dtype=jnp.bfloat16):
    """Pad/cast the weights once. Layout is [in, out] (PyTorch stores [out, in]).

    D and H are zero-padded to multiples of 128 (lane-dense MXU tiles); the output
    feature dim O is left unpadded (the kernel writes a full-dim last block).
    Biases stay f32 so bias+ReLU run in f32 regardless of compute_dtype.
    """
    D, H = w1.shape
    H2, O = w2.shape
    assert H2 == H, "w1/w2 hidden dims disagree"

    D_pad = _round_up(D, 128)
    H_pad = _round_up(H, 128)

    w1p = w1.astype(compute_dtype)
    if (D_pad, H_pad) != (D, H):
        w1p = jnp.zeros((D_pad, H_pad), compute_dtype).at[:D, :H].set(w1p)
    w2p = w2.astype(compute_dtype)
    if H_pad != H:
        w2p = jnp.zeros((H_pad, O), compute_dtype).at[:H, :].set(w2p)
    b1p = jnp.zeros((1, H_pad), jnp.float32).at[0, :H].set(b1.astype(jnp.float32))
    b2p = b2.astype(jnp.float32).reshape(1, O)

    return {"w1": w1p, "b1": b1p, "w2": w2p, "b2": b2p,
            "input_dim": D, "hidden": H, "output_dim": O}


# -----------------------------------------------------------------------------
# VMEM budget (per-generation, derived from hardware info)
# -----------------------------------------------------------------------------
def _vmem_budget_and_limit():
    try:
        cap = int(pltpu.get_tpu_info().vmem_capacity_bytes)
    except Exception:
        cap = 64 << 20                       # conservative default (v7x per-TC)
    budget = (cap * 3) // 4                  # ~48 MiB on v7x, ~96 MiB on v5e/v6e
    limit = min(cap - (4 << 20), budget + (16 << 20))
    return budget, int(limit)


# -----------------------------------------------------------------------------
# Wrapper
# -----------------------------------------------------------------------------
def _none_linear_impl(x, params, *, block_b, min_batch_steps, single_buffer_weights):
    B, D = x.shape
    assert D == params["input_dim"], "input feature dim mismatch"
    w1p, b1p, w2p, b2p = params["w1"], params["b1"], params["w2"], params["b2"]
    D_pad, H_pad = w1p.shape
    O = w2p.shape[1]

    out_dtype = x.dtype
    cdtype = w1p.dtype
    xbytes = jnp.dtype(x.dtype).itemsize
    obytes = jnp.dtype(out_dtype).itemsize
    cbytes = jnp.dtype(cdtype).itemsize
    sublane = 8 if xbytes >= 4 else 32 // xbytes

    # Pad x's feature dim only when needed; never cast here (kernel casts in VMEM).
    if D_pad != D:
        xp = jnp.zeros((B, D_pad), x.dtype).at[:, :D].set(x)
    else:
        xp = x

    budget, vmem_limit = _vmem_budget_and_limit()

    # Batch tile: keep >= min_batch_steps grid steps when B allows, so the
    # "parallel" batch axis can shard across v7x's two TensorCores and DMA/compute
    # overlap exists; no padding of B (Pallas handles a ragged last tile).
    if B <= sublane:
        TB = B                                            # block == full array dim
    else:
        TB = min(block_b, _round_up(pl.cdiv(B, min_batch_steps), sublane))
        TB = max(sublane, TB)

    def vmem_bytes(tb, weight_bufs):
        act = 2 * tb * D_pad * xbytes                     # double-buffered x tiles
        out = 2 * tb * O * obytes                         # double-buffered out tiles
        weights = weight_bufs * ((D_pad * H_pad + H_pad * O) * cbytes
                                 + (H_pad + O) * 4)
        inter = tb * (D_pad * cbytes + (H_pad + O) * 4)   # casted x, f32 h and y
        return act + out + weights + inter

    wbufs = 1 if single_buffer_weights else 2
    while TB > sublane and vmem_bytes(TB, wbufs) > budget:
        TB = max(sublane, _round_up(TB // 2, sublane))

    grid = (pl.cdiv(B, TB),)

    weight_kw = {"pipeline_mode": pl.Buffered(1)} if single_buffer_weights else {}
    in_specs = [
        pl.BlockSpec((TB, D_pad), lambda i: (i, 0)),                 # streamed x tile
        pl.BlockSpec((D_pad, H_pad), lambda i: (0, 0), **weight_kw),  # resident w1
        pl.BlockSpec((1, H_pad), lambda i: (0, 0), **weight_kw),      # resident b1
        pl.BlockSpec((H_pad, O), lambda i: (0, 0), **weight_kw),      # resident w2
        pl.BlockSpec((1, O), lambda i: (0, 0), **weight_kw),          # resident b2
    ]
    out_specs = pl.BlockSpec((TB, O), lambda i: (i, 0))

    flops = 2 * B * (D_pad * H_pad + H_pad * O)
    bytes_accessed = (xp.size * xbytes + w1p.size * cbytes + w2p.size * cbytes
                      + b1p.size * 4 + b2p.size * 4 + B * O * obytes)

    return pl.pallas_call(
        _none_linear_kernel,
        out_shape=jax.ShapeDtypeStruct((B, O), out_dtype),
        grid=grid,
        in_specs=in_specs,
        out_specs=out_specs,
        compiler_params=pltpu.CompilerParams(
            dimension_semantics=("parallel",),
            vmem_limit_bytes=vmem_limit),
        cost_estimate=pl.CostEstimate(
            flops=flops, transcendentals=0, bytes_accessed=bytes_accessed),
    )(xp, w1p, b1p, w2p, b2p)


def none_linear(x, params, *, block_b=1024, min_batch_steps=4):
    """x: [B, D]; params from `prepare_params`  ->  [B, O]."""
    try:
        return _none_linear_impl(x, params, block_b=block_b,
                                 min_batch_steps=min_batch_steps,
                                 single_buffer_weights=True)
    except Exception:
        # pipeline_mode=pl.Buffered(1) unsupported on this jax/Mosaic build:
        # fall back to default (double-buffered) resident weights.
        return _none_linear_impl(x, params, block_b=block_b,
                                 min_batch_steps=min_batch_steps,
                                 single_buffer_weights=False)


# -----------------------------------------------------------------------------
# PyTorch-style init + reference
# -----------------------------------------------------------------------------
def init_params(key, input_dim, output_dim, dtype=jnp.float32):
    """Deterministic PyTorch-style (uniform +/- 1/sqrt(fan_in)) init, [in, out] layout."""
    hidden = input_dim // 2
    k1, k2, k3, k4 = jax.random.split(key, 4)
    bound1 = 1.0 / (input_dim ** 0.5)
    bound2 = 1.0 / (hidden ** 0.5)
    w1 = jax.random.uniform(k1, (input_dim, hidden), dtype, -bound1, bound1)
    b1 = jax.random.uniform(k2, (hidden,), dtype, -bound1, bound1)
    w2 = jax.random.uniform(k3, (hidden, output_dim), dtype, -bound2, bound2)
    b2 = jax.random.uniform(k4, (output_dim,), dtype, -bound2, bound2)
    return w1, b1, w2, b2


def _reference(x, w1, b1, w2, b2):
    # eval-mode dropout == identity
    return jnp.maximum(x @ w1 + b1, 0.0) @ w2 + b2


if __name__ == "__main__":
    key = jax.random.PRNGKey(0)
    batch, input_dim, output_dim = 8, 32, 8            # hidden = 16

    kx, kp = jax.random.split(key)
    x = jax.random.normal(kx, (batch, input_dim), jnp.float32)
    w1, b1, w2, b2 = init_params(kp, input_dim, output_dim)
    ref = _reference(x, w1, b1, w2, b2)

    # Weights are padded/cast ONCE (hoisted out of the per-call path).
    params_f32 = prepare_params(w1, b1, w2, b2, compute_dtype=jnp.float32)
    params_bf16 = prepare_params(w1, b1, w2, b2)        # default bf16 MXU path

    # f32 compute path: tight tolerance against the f32 reference.
    out_f32 = jax.block_until_ready(none_linear(x, params_f32))
    assert out_f32.shape == (batch, output_dim)
    assert jnp.allclose(out_f32, ref, atol=1e-5, rtol=1e-5)

    # bf16 MXU path (default; f32 accumulation): looser tolerance.
    out_bf16 = jax.block_until_ready(none_linear(x, params_bf16))
    assert out_bf16.shape == (batch, output_dim)
    assert jnp.allclose(out_bf16, ref, atol=3e-2, rtol=3e-2)

    # Multi-tile "parallel" grid (B=48 -> TB=16, 3 steps) reusing the same params.
    x_big = jax.random.normal(kx, (48, input_dim), jnp.float32)
    ref_big = _reference(x_big, w1, b1, w2, b2)
    out_big = jax.block_until_ready(none_linear(x_big, params_f32))
    assert out_big.shape == (48, output_dim)
    assert jnp.allclose(out_big, ref_big, atol=1e-5, rtol=1e-5)

    # Ragged last tile (B=20 -> TB=8, 3 steps, final tile partially out of bounds).
    x_rag = jax.random.normal(kx, (20, input_dim), jnp.float32)
    ref_rag = _reference(x_rag, w1, b1, w2, b2)
    out_rag = jax.block_until_ready(none_linear(x_rag, params_f32))
    assert out_rag.shape == (20, output_dim)
    assert jnp.allclose(out_rag, ref_rag, atol=1e-5, rtol=1e-5)

    print("KERNEL_OK")
</pallas_src>

<mosaic_0001>
module attributes {stable_mosaic.version = 11 : i64} {
  func.func @_none_linear_kernel(%arg0: i32, %arg1: memref<8x128xf32, #tpu.memory_space<vmem>>, %arg2: memref<128x128xf32, #tpu.memory_space<vmem>>, %arg3: memref<1x128xf32, #tpu.memory_space<vmem>>, %arg4: memref<128x8xf32, #tpu.memory_space<vmem>>, %arg5: memref<1x8xf32, #tpu.memory_space<vmem>>, %arg6: memref<8x8xf32, #tpu.memory_space<vmem>>) attributes {dimension_semantics = [#tpu.dimension_semantics<parallel>], iteration_bounds = array<i64: 1>, scalar_prefetch = 0 : i64, scratch_operands = 0 : i64, tpu.core_type = #tpu.core_type<tc>, window_params = [{transform_indices = @transform_0, window_bounds = array<i64: 8, 128>}, {pipeline_mode = #tpu.pipeline_mode<synchronous>, transform_indices = @transform_1, window_bounds = array<i64: 128, 128>}, {pipeline_mode = #tpu.pipeline_mode<synchronous>, transform_indices = @transform_2, window_bounds = array<i64: 1, 128>}, {pipeline_mode = #tpu.pipeline_mode<synchronous>, transform_indices = @transform_3, window_bounds = array<i64: 128, 8>}, {pipeline_mode = #tpu.pipeline_mode<synchronous>, transform_indices = @transform_4, window_bounds = array<i64: 1, 8>}, {transform_indices = @transform_5, window_bounds = array<i64: 8, 8>}]} {
    %c0 = arith.constant 0 : index
    %c0_0 = arith.constant 0 : index
    %0 = vector.load %arg1[%c0, %c0_0] : memref<8x128xf32, #tpu.memory_space<vmem>>, vector<8x128xf32>
    %c0_1 = arith.constant 0 : index
    %c0_2 = arith.constant 0 : index
    %1 = vector.load %arg2[%c0_1, %c0_2] : memref<128x128xf32, #tpu.memory_space<vmem>>, vector<128x128xf32>
    %cst = arith.constant dense<0.000000e+00> : vector<8x128xf32>
    %2 = tpu.matmul %0, %1, %cst {dimension_numbers = #tpu.dot_dimension_numbers<[1], [0], [0], [1], [0, 0, 1, 1], [], []>} : vector<8x128xf32>, vector<128x128xf32>, vector<8x128xf32> -> vector<8x128xf32>
    %c0_3 = arith.constant 0 : index
    %c0_4 = arith.constant 0 : index
    %3 = vector.load %arg3[%c0_3, %c0_4] : memref<1x128xf32, #tpu.memory_space<vmem>>, vector<1x128xf32>
    %4 = vector.broadcast %3 : vector<1x128xf32> to vector<8x128xf32>
    %5 = arith.addf %2, %4 : vector<8x128xf32>
    %cst_5 = arith.constant 0.000000e+00 : f32
    %6 = vector.broadcast %cst_5 : f32 to vector<8x128xf32>
    %7 = arith.maximumf %5, %6 : vector<8x128xf32>
    %c0_6 = arith.constant 0 : index
    %c0_7 = arith.constant 0 : index
    %8 = vector.load %arg4[%c0_6, %c0_7] : memref<128x8xf32, #tpu.memory_space<vmem>>, vector<128x8xf32>
    %cst_8 = arith.constant dense<0.000000e+00> : vector<8x8xf32>
    %9 = tpu.matmul %7, %8, %cst_8 {dimension_numbers = #tpu.dot_dimension_numbers<[1], [0], [0], [1], [0, 0, 1, 1], [], []>} : vector<8x128xf32>, vector<128x8xf32>, vector<8x8xf32> -> vector<8x8xf32>
    %c0_9 = arith.constant 0 : index
    %c0_10 = arith.constant 0 : index
    %10 = vector.load %arg5[%c0_9, %c0_10] : memref<1x8xf32, #tpu.memory_space<vmem>>, vector<1x8xf32>
    %11 = vector.broadcast %10 : vector<1x8xf32> to vector<8x8xf32>
    %12 = arith.addf %9, %11 : vector<8x8xf32>
    %c0_11 = arith.constant 0 : index
    %c0_12 = arith.constant 0 : index
    %13 = vector.load %arg6[%c0_11, %c0_12] : memref<8x8xf32, #tpu.memory_space<vmem>>, vector<8x8xf32>
    tpu.vector_store %arg6[%c0_11, %c0_12], %12 {strides = array<i32>} : memref<8x8xf32, #tpu.memory_space<vmem>>, vector<8x8xf32>,
    return
  }
  func.func @transform_0(%arg0: i32) -> (i32, i32) {
    %c0_i32 = arith.constant 0 : i32
    %c0_i32_0 = arith.constant 0 : i32
    return %arg0, %c0_i32 : i32, i32
  }
  func.func @transform_1(%arg0: i32) -> (i32, i32) {
    %c0_i32 = arith.constant 0 : i32
    %c0_i32_0 = arith.constant 0 : i32
    %c0_i32_1 = arith.constant 0 : i32
    return %c0_i32, %c0_i32_0 : i32, i32
  }
  func.func @transform_2(%arg0: i32) -> (i32, i32) {
    %c0_i32 = arith.constant 0 : i32
    %c0_i32_0 = arith.constant 0 : i32
    %c0_i32_1 = arith.constant 0 : i32
    return %c0_i32, %c0_i32_0 : i32, i32
  }
  func.func @transform_3(%arg0: i32) -> (i32, i32) {
    %c0_i32 = arith.constant 0 : i32
    %c0_i32_0 = arith.constant 0 : i32
    %c0_i32_1 = arith.constant 0 : i32
    return %c0_i32, %c0_i32_0 : i32, i32
  }
  func.func @transform_4(%arg0: i32) -> (i32, i32) {
    %c0_i32 = arith.constant 0 : i32
    %c0_i32_0 = arith.constant 0 : i32
    %c0_i32_1 = arith.constant 0 : i32
    return %c0_i32, %c0_i32_0 : i32, i32
  }
  func.func @transform_5(%arg0: i32) -> (i32, i32) {
    %c0_i32 = arith.constant 0 : i32
    %c0_i32_0 = arith.constant 0 : i32
    return %arg0, %c0_i32 : i32, i32
  }
}

module attributes {stable_mosaic.version = 11 : i64} {
  func.func @_none_linear_kernel(%arg0: i32, %arg1: memref<8x128xf32, #tpu.memory_space<vmem>>, %arg2: memref<128x128xf32, #tpu.memory_space<vmem>>, %arg3: memref<1x128xf32, #tpu.memory_space<vmem>>, %arg4: memref<128x8xf32, #tpu.memory_space<vmem>>, %arg5: memref<1x8xf32, #tpu.memory_space<vmem>>, %arg6: memref<8x8xf32, #tpu.memory_space<vmem>>) attributes {dimension_semantics = [#tpu.dimension_semantics<parallel>], iteration_bounds = array<i64: 1>, scalar_prefetch = 0 : i64, scratch_operands = 0 : i64, tpu.core_type = #tpu.core_type<tc>, window_params = [{transform_indices = @transform_0, window_bounds = array<i64: 8, 128>}, {pipeline_mode = #tpu.pipeline_mode<synchronous>, transform_indices = @transform_1, window_bounds = array<i64: 128, 128>}, {pipeline_mode = #tpu.pipeline_mode<synchronous>, transform_indices = @transform_2, window_bounds = array<i64: 1, 128>}, {pipeline_mode = #tpu.pipeline_mode<synchronous>, transform_indices = @transform_3, window_bounds = array<i64: 128, 8>}, {pipeline_mode = #tpu.pipeline_mode<synchronous>, transform_indices = @transform_4, window_bounds = array<i64: 1, 8>}, {transform_indices = @transform_5, window_bounds = array<i64: 8, 8>}]} {
    %c0 = arith.constant 0 : index
    %c0_0 = arith.constant 0 : index
    %0 = vector.load %arg1[%c0, %c0_0] : memref<8x128xf32, #tpu.memory_space<vmem>>, vector<8x128xf32>
    %c0_1 = arith.constant 0 : index
    %c0_2 = arith.constant 0 : index
    %1 = vector.load %arg2[%c0_1, %c0_2] : memref<128x128xf32, #tpu.memory_space<vmem>>, vector<128x128xf32>
    %cst = arith.constant dense<0.000000e+00> : vector<8x128xf32>
    %2 = tpu.matmul %0, %1, %cst {dimension_numbers = #tpu.dot_dimension_numbers<[1], [0], [0], [1], [0, 0, 1, 1], [], []>} : vector<8x128xf32>, vector<128x128xf32>, vector<8x128xf32> -> vector<8x128xf32>
    %c0_3 = arith.constant 0 : index
    %c0_4 = arith.constant 0 : index
    %3 = vector.load %arg3[%c0_3, %c0_4] : memref<1x128xf32, #tpu.memory_space<vmem>>, vector<1x128xf32>
    %4 = vector.broadcast %3 : vector<1x128xf32> to vector<8x128xf32>
    %5 = arith.addf %2, %4 : vector<8x128xf32>
    %cst_5 = arith.constant 0.000000e+00 : f32
    %6 = vector.broadcast %cst_5 : f32 to vector<8x128xf32>
    %7 = arith.maximumf %5, %6 : vector<8x128xf32>
    %c0_6 = arith.constant 0 : index
    %c0_7 = arith.constant 0 : index
    %8 = vector.load %arg4[%c0_6, %c0_7] : memref<128x8xf32, #tpu.memory_space<vmem>>, vector<128x8xf32>
    %cst_8 = arith.constant dense<0.000000e+00> : vector<8x8xf32>
    %9 = tpu.matmul %7, %8, %cst_8 {dimension_numbers = #tpu.dot_dimension_numbers<[1], [0], [0], [1], [0, 0, 1, 1], [], []>} : vector<8x128xf32>, vector<128x8xf32>, vector<8x8xf32> -> vector<8x8xf32>
    %c0_9 = arith.constant 0 : index
    %c0_10 = arith.constant 0 : index
    %10 = vector.load %arg5[%c0_9, %c0_10] : memref<1x8xf32, #tpu.memory_space<vmem>>, vector<1x8xf32>
    %11 = vector.broadcast %10 : vector<1x8xf32> to vector<8x8xf32>
    %12 = arith.addf %9, %11 : vector<8x8xf32>
    %c0_11 = arith.constant 0 : index
    %c0_12 = arith.constant 0 : index
    %13 = vector.load %arg6[%c0_11, %c0_12] : memref<8x8xf32, #tpu.memory_space<vmem>>, vector<8x8xf32>
    tpu.vector_store %arg6[%c0_11, %c0_12], %12 {strides = array<i32>} : memref<8x8xf32, #tpu.memory_space<vmem>>, vector<8x8xf32>,
    return
  }
  func.func @transform_0(%arg0: i32) -> (i32, i32) {
    %c0_i32 = arith.constant 0 : i32
    %c0_i32_0 = arith.constant 0 : i32
    return %arg0, %c0_i32 : i32, i32
  }
  func.func @transform_1(%arg0: i32) -> (i32, i32) {
    %c0_i32 = arith.constant 0 : i32
    %c0_i32_0 = arith.constant 0 : i32
    %c0_i32_1 = arith.constant 0 : i32
    return %c0_i32, %c0_i32_0 : i32, i32
  }
  func.func @transform_2(%arg0: i32) -> (i32, i32) {
    %c0_i32 = arith.constant 0 : i32
    %c0_i32_0 = arith.constant 0 : i32
    %c0_i32_1 = arith.constant 0 : i32
    return %c0_i32, %c0_i32_0 : i32, i32
  }
  func.func @transform_3(%arg0: i32) -> (i32, i32) {
    %c0_i32 = arith.constant 0 : i32
    %c0_i32_0 = arith.constant 0 : i32
    %c0_i32_1 = arith.constant 0 : i32
    return %c0_i32, %c0_i32_0 : i32, i32
  }
  func.func @transform_4(%arg0: i32) -> (i32, i32) {
    %c0_i32 = arith.constant 0 : i32
    %c0_i32_0 = arith.constant 0 : i32
    %c0_i32_1 = arith.constant 0 : i32
    return %c0_i32, %c0_i32_0 : i32, i32
  }
  func.func @transform_5(%arg0: i32) -> (i32, i32) {
    %c0_i32 = arith.constant 0 : i32
    %c0_i32_0 = arith.constant 0 : i32
    return %arg0, %c0_i32 : i32, i32
  }
}

</mosaic_0001>

<llo_original>
// kernel: tpu_custom_call.1
$region0: #{tpu_custom_call.1}
  #allocation0 [shape = 'u32[]', space=smem, size = 0x4, offset = 0x4, fixed_abs, tag = 'smem constant byte address 0x4 - core index']
  #allocation1 [shape = 'u32[72,128]{1,0:T(1,128)}', space=vmem, size = 0x9000, scoped, tag = 'internal scratch']
  %s0 = inlined_call_operand.vmem [shape: f32[8,128], index: 0, kind: input, shape index: {}]
  %s1 = inlined_call_operand.vmem [shape: f32[128,128], index: 1, kind: input, shape index: {}]
  %s2 = inlined_call_operand.vmem [shape: f32[1,128], index: 2, kind: input, shape index: {}]
  %s3 = inlined_call_operand.vmem [shape: f32[128,8], index: 3, kind: input, shape index: {}]
  %s4 = inlined_call_operand.vmem [shape: f32[1,8], index: 4, kind: input, shape index: {}]
  %s5 = inlined_call_operand.hbm [shape: f32[8,8], index: 5, kind: output, shape index: {}]
  %s6 = sld [smem:[#allocation0]]
  $region30: #{tpu_custom_call.1} parent=0
    _
  %s8 = ssub.s32 1, %s6
  %s9 = scalar_select 0, %s8, %s6
  $region1: #{tpu_custom_call.1} parent=0
    #allocation2 [shape = 'u8[4096]{0}', space=vmem, size = 0x1000, scoped, tag = 'output window, operand 0, single buffered']
    #allocation3 [shape = 's32[1]{0}', space=sflag, size = 0x4, scoped, tag = 'scoped memory for tpu_custom_call.1']
    %10 = vsyncpa [#allocation3], 0
    // Predicated region
    $region2: #{tpu_custom_call.1} parent=1 // pred_check
      _
    $region3: #{tpu_custom_call.1} parent=1 // pred_check_branch
      %12 = sbr.rel (0) target = $region5
    $region4: #{tpu_custom_call.1} parent=1 // pred_region
      _
    $region5: #{tpu_custom_call.1} parent=1 // pred_fallthru
      _
    // Predicated region
    $region6: #{tpu_custom_call.1} parent=1 // pred_check
      _
    $region7: #{tpu_custom_call.1} parent=1 // pred_check_branch
      %14 = sbr.rel (0) target = $region9
    $region8: #{tpu_custom_call.1} parent=1 // pred_region
      _
    $region9: #{tpu_custom_call.1} parent=1 // pred_fallthru
      _
    // Predicated region
    $region10: #{tpu_custom_call.1} parent=1 // pred_check
      _
    $region11: #{tpu_custom_call.1} parent=1 // pred_check_branch
      %16 = sbr.rel (0) target = $region13
    $region12: #{tpu_custom_call.1} parent=1 // pred_region
      _
    $region13: #{tpu_custom_call.1} parent=1 // pred_fallthru
      _
    // Predicated region
    $region14: #{tpu_custom_call.1} parent=1 // pred_check
      _
    $region15: #{tpu_custom_call.1} parent=1 // pred_check_branch
      %18 = sbr.rel (0) target = $region17
    $region16: #{tpu_custom_call.1} parent=1 // pred_region
      _
    $region17: #{tpu_custom_call.1} parent=1 // pred_fallthru
      _
    // Predicated region
    $region18: #{tpu_custom_call.1} parent=1 // pred_check
      _
    $region19: #{tpu_custom_call.1} parent=1 // pred_check_branch
      %20 = sbr.rel (0) target = $region21
    $region20: #{tpu_custom_call.1} parent=1 // pred_region
      _
    $region21: #{tpu_custom_call.1} parent=1 // pred_fallthru
      _
    %v21 = vld [vmem:[%s0] sm:$0xff]
    %v22 = vld [vmem:[%s1] sm:$0xff]
    %v23 = vld [vmem:[%s1 + $0x8] sm:$0xff]
    %v24 = vld [vmem:[%s1 + $0x10] sm:$0xff]
    %v25 = vld [vmem:[%s1 + $0x18] sm:$0xff]
    %v26 = vld [vmem:[%s1 + $0x20] sm:$0xff]
    %v27 = vld [vmem:[%s1 + $0x28] sm:$0xff]
    %v28 = vld [vmem:[%s1 + $0x30] sm:$0xff]
    %v29 = vld [vmem:[%s1 + $0x38] sm:$0xff]
    %v30 = vld [vmem:[%s1 + $0x40] sm:$0xff]
    %v31 = vld [vmem:[%s1 + $0x48] sm:$0xff]
    %v32 = vld [vmem:[%s1 + $0x50] sm:$0xff]
    %v33 = vld [vmem:[%s1 + $0x58] sm:$0xff]
    %v34 = vld [vmem:[%s1 + $0x60] sm:$0xff]
    %v35 = vld [vmem:[%s1 + $0x68] sm:$0xff]
    %v36 = vld [vmem:[%s1 + $0x70] sm:$0xff]
    %v37 = vld [vmem:[%s1 + $0x78] sm:$0xff]
    %v38 = vld [vmem:[%s2] sm:$0x1]
    %v40 = vperm.slane %v38, 0
    %42 = vmatpush.msra.mxu0 %v37
    %43 = vmatpush.msra.mxu0 %v36
    %44 = vmatpush.msra.mxu0 %v35
    %45 = vmatpush.msra.mxu0 %v34
    %46 = vmatpush.msra.mxu0 %v33
    %47 = vmatpush.msra.mxu0 %v32
    %48 = vmatpush.msra.mxu0 %v31
    %49 = vmatpush.msra.mxu0 %v30
    %50 = vmatpush.msra.mxu0 %v29
    %51 = vmatpush.msra.mxu0 %v28
    %52 = vmatpush.msra.mxu0 %v27
    %53 = vmatpush.msra.mxu0 %v26
    %54 = vmatpush.msra.mxu0 %v25
    %55 = vmatpush.msra.mxu0 %v24
    %56 = vmatpush.msra.mxu0 %v23
    %57 = vmatpush.msra.mxu0 %v22
    %58 = vmatmul.f32.gmra.mxu0 %v21
    %v59 = vpop.f32.mrf.mxu0
    %v60 = vadd.f32 %v40, %v59
    %61 = vdwg.mxu0
    %v62 = vmax.f32 %v60, 0.0
    %v63 = vld [vmem:[%s3] sm:$0xff]
    %v64 = vld [vmem:[%s3 + $0x8] sm:$0xff]
    %v65 = vld [vmem:[%s3 + $0x10] sm:$0xff]
    %v66 = vld [vmem:[%s3 + $0x18] sm:$0xff]
    %v67 = vld [vmem:[%s3 + $0x20] sm:$0xff]
    %v68 = vld [vmem:[%s3 + $0x28] sm:$0xff]
    %v69 = vld [vmem:[%s3 + $0x30] sm:$0xff]
    %v70 = vld [vmem:[%s3 + $0x38] sm:$0xff]
    %v71 = vld [vmem:[%s3 + $0x40] sm:$0xff]
    %v72 = vld [vmem:[%s3 + $0x48] sm:$0xff]
    %v73 = vld [vmem:[%s3 + $0x50] sm:$0xff]
    %v74 = vld [vmem:[%s3 + $0x58] sm:$0xff]
    %v75 = vld [vmem:[%s3 + $0x60] sm:$0xff]
    %v76 = vld [vmem:[%s3 + $0x68] sm:$0xff]
    %v77 = vld [vmem:[%s3 + $0x70] sm:$0xff]
    %v78 = vld [vmem:[%s3 + $0x78] sm:$0xff]
    %v79 = vld [vmem:[%s4] sm:$0x1]
    %v81 = vperm.slane %v79, 0
    %83 = vmatpush.msra.mxu0 %v78
    %84 = vmatpush.msra.mxu0 %v77
    %85 = vmatpush.msra.mxu0 %v76
    %86 = vmatpush.msra.mxu0 %v75
    %87 = vmatpush.msra.mxu0 %v74
    %88 = vmatpush.msra.mxu0 %v73
    %89 = vmatpush.msra.mxu0 %v72
    %90 = vmatpush.msra.mxu0 %v71
    %91 = vmatpush.msra.mxu0 %v70
    %92 = vmatpush.msra.mxu0 %v69
    %93 = vmatpush.msra.mxu0 %v68
    %94 = vmatpush.msra.mxu0 %v67
    %95 = vmatpush.msra.mxu0 %v66
    %96 = vmatpush.msra.mxu0 %v65
    %97 = vmatpush.msra.mxu0 %v64
    %98 = vmatpush.msra.mxu0 %v63
    %99 = vmatmul.f32.gmra.mxu0 %v62
    %v100 = vpop.f32.mrf.mxu0
    %v101 = vadd.f32 %v81, %v100
    %102 = vdwg.mxu0
    %vm103 = vcmask 64512
    %104 = vst.msk [vmem:[#allocation2] sm:$0xff] %vm103, %v101
    // Predicated region
    $region22: #{tpu_custom_call.1} parent=1 // pred_check
      _
    $region23: #{tpu_custom_call.1} parent=1 // pred_check_branch
      %106 = sbr.rel (0) target = $region25
    $region24: #{tpu_custom_call.1} parent=1 // pred_region
      %108 = vsyncadd [#allocation3], 0
      %s110 = sshll.u32 [#allocation2], 4
      %s111 = int_to_ptr.vmem [resolvable:$true] %s110
      %s112 = sshll.u32 %s5, 4
      %s113 = int_to_ptr.hbm [resolvable:$true] %s112
      %115 = dma.vmem_to_hbm [thread:$0]  %s111, 128, %s113, [#allocation3]
    $region25: #{tpu_custom_call.1} parent=1 // pred_fallthru
      _
    // Predicated region
    $region26: #{tpu_custom_call.1} parent=1 // pred_check
      _
    $region27: #{tpu_custom_call.1} parent=1 // pred_check_branch
      %117 = sbr.rel (0) target = $region29
    $region28: #{tpu_custom_call.1} parent=1 // pred_region
      %119 = dma.done [#allocation3], 128
    $region29: #{tpu_custom_call.1} parent=1 // pred_fallthru
      _
    %120 = vsyncpa [#allocation3], 1

// kernel: tpu_custom_call.1
$region0: #{tpu_custom_call.1}
  #allocation0 [shape = 'u32[]', space=smem, size = 0x4, offset = 0x4, fixed_abs, tag = 'smem constant byte address 0x4 - core index']
  #allocation1 [shape = 'u32[72,128]{1,0:T(1,128)}', space=vmem, size = 0x9000, scoped, tag = 'internal scratch']
  %s0 = inlined_call_operand.vmem [shape: f32[8,128], index: 0, kind: input, shape index: {}]
  %s1 = inlined_call_operand.vmem [shape: f32[128,128], index: 1, kind: input, shape index: {}]
  %s2 = inlined_call_operand.vmem [shape: f32[1,128], index: 2, kind: input, shape index: {}]
  %s3 = inlined_call_operand.vmem [shape: f32[128,8], index: 3, kind: input, shape index: {}]
  %s4 = inlined_call_operand.vmem [shape: f32[1,8], index: 4, kind: input, shape index: {}]
  %s5 = inlined_call_operand.hbm [shape: f32[8,8], index: 5, kind: output, shape index: {}]
  %s6 = sld [smem:[#allocation0]]
  $region30: #{tpu_custom_call.1} parent=0
    _
  %s8 = ssub.s32 1, %s6
  %s9 = scalar_select 0, %s8, %s6
  $region1: #{tpu_custom_call.1} parent=0
    #allocation2 [shape = 'u8[4096]{0}', space=vmem, size = 0x1000, scoped, tag = 'output window, operand 0, single buffered']
    #allocation3 [shape = 's32[1]{0}', space=sflag, size = 0x4, scoped, tag = 'scoped memory for tpu_custom_call.1']
    %10 = vsyncpa [#allocation3], 0
    // Predicated region
    $region2: #{tpu_custom_call.1} parent=1 // pred_check
      _
    $region3: #{tpu_custom_call.1} parent=1 // pred_check_branch
      %12 = sbr.rel (0) target = $region5
    $region4: #{tpu_custom_call.1} parent=1 // pred_region
      _
    $region5: #{tpu_custom_call.1} parent=1 // pred_fallthru
      _
    // Predicated region
    $region6: #{tpu_custom_call.1} parent=1 // pred_check
      _
    $region7: #{tpu_custom_call.1} parent=1 // pred_check_branch
      %14 = sbr.rel (0) target = $region9
    $region8: #{tpu_custom_call.1} parent=1 // pred_region
      _
    $region9: #{tpu_custom_call.1} parent=1 // pred_fallthru
      _
    // Predicated region
    $region10: #{tpu_custom_call.1} parent=1 // pred_check
      _
    $region11: #{tpu_custom_call.1} parent=1 // pred_check_branch
      %16 = sbr.rel (0) target = $region13
    $region12: #{tpu_custom_call.1} parent=1 // pred_region
      _
    $region13: #{tpu_custom_call.1} parent=1 // pred_fallthru
      _
    // Predicated region
    $region14: #{tpu_custom_call.1} parent=1 // pred_check
      _
    $region15: #{tpu_custom_call.1} parent=1 // pred_check_branch
      %18 = sbr.rel (0) target = $region17
    $region16: #{tpu_custom_call.1} parent=1 // pred_region
      _
    $region17: #{tpu_custom_call.1} parent=1 // pred_fallthru
      _
    // Predicated region
    $region18: #{tpu_custom_call.1} parent=1 // pred_check
      _
    $region19: #{tpu_custom_call.1} parent=1 // pred_check_branch
      %20 = sbr.rel (0) target = $region21
    $region20: #{tpu_custom_call.1} parent=1 // pred_region
      _
    $region21: #{tpu_custom_call.1} parent=1 // pred_fallthru
      _
    %v21 = vld [vmem:[%s0] sm:$0xff]
    %v22 = vld [vmem:[%s1] sm:$0xff]
    %v23 = vld [vmem:[%s1 + $0x8] sm:$0xff]
    %v24 = vld [vmem:[%s1 + $0x10] sm:$0xff]
    %v25 = vld [vmem:[%s1 + $0x18] sm:$0xff]
    %v26 = vld [vmem:[%s1 + $0x20] sm:$0xff]
    %v27 = vld [vmem:[%s1 + $0x28] sm:$0xff]
    %v28 = vld [vmem:[%s1 + $0x30] sm:$0xff]
    %v29 = vld [vmem:[%s1 + $0x38] sm:$0xff]
    %v30 = vld [vmem:[%s1 + $0x40] sm:$0xff]
    %v31 = vld [vmem:[%s1 + $0x48] sm:$0xff]
    %v32 = vld [vmem:[%s1 + $0x50] sm:$0xff]
    %v33 = vld [vmem:[%s1 + $0x58] sm:$0xff]
    %v34 = vld [vmem:[%s1 + $0x60] sm:$0xff]
    %v35 = vld [vmem:[%s1 + $0x68] sm:$0xff]
    %v36 = vld [vmem:[%s1 + $0x70] sm:$0xff]
    %v37 = vld [vmem:[%s1 + $0x78] sm:$0xff]
    %v38 = vld [vmem:[%s2] sm:$0x1]
    %v40 = vperm.slane %v38, 0
    %42 = vmatpush.msra.mxu0 %v37
    %43 = vmatpush.msra.mxu0 %v36
    %44 = vmatpush.msra.mxu0 %v35
    %45 = vmatpush.msra.mxu0 %v34
    %46 = vmatpush.msra.mxu0 %v33
    %47 = vmatpush.msra.mxu0 %v32
    %48 = vmatpush.msra.mxu0 %v31
    %49 = vmatpush.msra.mxu0 %v30
    %50 = vmatpush.msra.mxu0 %v29
    %51 = vmatpush.msra.mxu0 %v28
    %52 = vmatpush.msra.mxu0 %v27
    %53 = vmatpush.msra.mxu0 %v26
    %54 = vmatpush.msra.mxu0 %v25
    %55 = vmatpush.msra.mxu0 %v24
    %56 = vmatpush.msra.mxu0 %v23
    %57 = vmatpush.msra.mxu0 %v22
    %58 = vmatmul.f32.gmra.mxu0 %v21
    %v59 = vpop.f32.mrf.mxu0
    %v60 = vadd.f32 %v40, %v59
    %61 = vdwg.mxu0
    %v62 = vmax.f32 %v60, 0.0
    %v63 = vld [vmem:[%s3] sm:$0xff]
    %v64 = vld [vmem:[%s3 + $0x8] sm:$0xff]
    %v65 = vld [vmem:[%s3 + $0x10] sm:$0xff]
    %v66 = vld [vmem:[%s3 + $0x18] sm:$0xff]
    %v67 = vld [vmem:[%s3 + $0x20] sm:$0xff]
    %v68 = vld [vmem:[%s3 + $0x28] sm:$0xff]
    %v69 = vld [vmem:[%s3 + $0x30] sm:$0xff]
    %v70 = vld [vmem:[%s3 + $0x38] sm:$0xff]
    %v71 = vld [vmem:[%s3 + $0x40] sm:$0xff]
    %v72 = vld [vmem:[%s3 + $0x48] sm:$0xff]
    %v73 = vld [vmem:[%s3 + $0x50] sm:$0xff]
    %v74 = vld [vmem:[%s3 + $0x58] sm:$0xff]
    %v75 = vld [vmem:[%s3 + $0x60] sm:$0xff]
    %v76 = vld [vmem:[%s3 + $0x68] sm:$0xff]
    %v77 = vld [vmem:[%s3 + $0x70] sm:$0xff]
    %v78 = vld [vmem:[%s3 + $0x78] sm:$0xff]
    %v79 = vld [vmem:[%s4] sm:$0x1]
    %v81 = vperm.slane %v79, 0
    %83 = vmatpush.msra.mxu0 %v78
    %84 = vmatpush.msra.mxu0 %v77
    %85 = vmatpush.msra.mxu0 %v76
    %86 = vmatpush.msra.mxu0 %v75
    %87 = vmatpush.msra.mxu0 %v74
    %88 = vmatpush.msra.mxu0 %v73
    %89 = vmatpush.msra.mxu0 %v72
    %90 = vmatpush.msra.mxu0 %v71
    %91 = vmatpush.msra.mxu0 %v70
    %92 = vmatpush.msra.mxu0 %v69
    %93 = vmatpush.msra.mxu0 %v68
    %94 = vmatpush.msra.mxu0 %v67
    %95 = vmatpush.msra.mxu0 %v66
    %96 = vmatpush.msra.mxu0 %v65
    %97 = vmatpush.msra.mxu0 %v64
    %98 = vmatpush.msra.mxu0 %v63
    %99 = vmatmul.f32.gmra.mxu0 %v62
    %v100 = vpop.f32.mrf.mxu0
    %v101 = vadd.f32 %v81, %v100
    %102 = vdwg.mxu0
    %vm103 = vcmask 64512
    %104 = vst.msk [vmem:[#allocation2] sm:$0xff] %vm103, %v101
    // Predicated region
    $region22: #{tpu_custom_call.1} parent=1 // pred_check
      _
    $region23: #{tpu_custom_call.1} parent=1 // pred_check_branch
      %106 = sbr.rel (0) target = $region25
    $region24: #{tpu_custom_call.1} parent=1 // pred_region
      %108 = vsyncadd [#allocation3], 0
      %s110 = sshll.u32 [#allocation2], 4
      %s111 = int_to_ptr.vmem [resolvable:$true] %s110
      %s112 = sshll.u32 %s5, 4
      %s113 = int_to_ptr.hbm [resolvable:$true] %s112
      %115 = dma.vmem_to_hbm [thread:$0]  %s111, 128, %s113, [#allocation3]
    $region25: #{tpu_custom_call.1} parent=1 // pred_fallthru
      _
    // Predicated region
    $region26: #{tpu_custom_call.1} parent=1 // pred_check
      _
    $region27: #{tpu_custom_call.1} parent=1 // pred_check_branch
      %117 = sbr.rel (0) target = $region29
    $region28: #{tpu_custom_call.1} parent=1 // pred_region
      %119 = dma.done [#allocation3], 128
    $region29: #{tpu_custom_call.1} parent=1 // pred_fallthru
      _
    %120 = vsyncpa [#allocation3], 1

</llo_original>
